<compile_context>
chip_gen: v5e
topology: v5e:2x2
jax: 0.10.0
libtpu: 0.0.40
codegen_flags: <defaults>
</compile_context>

<pallas_src>
import jax
import jax.numpy as jnp
from jax.experimental import pallas as pl
from jax.experimental.pallas import tpu as pltpu

SEQ_LEN = 10
IN_FEATURES = 36           # 16 + 20, as in MLP(16 + 20, 1, ...)
HIDDEN_UNITS = (32, 32)    # hidden_units passed to MLP
N_CLASS = 1                # rnn input_size
N_HIDDEN = 1               # rnn hidden_size


def rnn_mlp_kernel(rnn_ref,        # SMEM (4,): [w_ih, w_hh, b_ih, b_hh]
                   xt_ref,         # VMEM (IN_FEATURES, TILE_B)  full transposed input
                   w1x_ref,        # VMEM (H1, IN_FEATURES)  W1 with seq columns zeroed
                   w1r_ref,        # VMEM (H1, SEQ_LEN)      W1 columns for hidden states
                   b1_ref,         # VMEM (H1, 1)
                   w2_ref,         # VMEM (H2, H1)
                   b2_ref,         # VMEM (H2, 1)
                   w3_ref,         # VMEM (1,  H2)
                   b3_ref,         # VMEM (1,  1)
                   o_ref,          # VMEM (1,  TILE_B)       lane-dense output row
                   hbuf_ref):      # VMEM scratch (SEQ_LEN, TILE_B)
    tile_b = o_ref.shape[-1]

    # RNN scalars straight from SMEM.  No jnp.full splats -- Mosaic folds the
    # scalar operand into the vector ops.
    w_ih = rnn_ref[0]
    w_hh = rnn_ref[1]
    bias = rnn_ref[2] + rnn_ref[3]          # b_ih + b_hh pre-folded (scalar add)

    # First Linear over the full 36-feature block.  W1's 10 recurrent columns
    # were zeroed host-side, so the raw x_t rows never leak into the Linear.
    acc = jnp.dot(w1x_ref[...], xt_ref[...],
                  preferred_element_type=jnp.float32) + b1_ref[...]

    # Dense pre-scale of the RNN inputs: one full-occupancy VALU pass over
    # (SEQ_LEN, tile_b) written into the hidden-state scratch.
    hbuf_ref[...] = xt_ref[pl.ds(1, SEQ_LEN), :] * w_ih + bias

    # tanh recurrence (hidden_size == 1) with the batch on the lane axis.
    # Each step reads its pre-scaled input row and overwrites it in place with
    # h_t, so the packed (SEQ_LEN, tile_b) block feeds the fold-in matmul.
    h = jnp.zeros((1, tile_b), dtype=jnp.float32)
    for t in range(SEQ_LEN):                           # static unroll (10 steps)
        h = jnp.tanh(hbuf_ref[pl.ds(t, 1), :] + h * w_hh)
        hbuf_ref[pl.ds(t, 1), :] = h
    # TODO(synk): v7x-only further win: fold the batch onto sublanes
    # ((8, tile_b//8) blocks) for ~8x fewer EUP/vst issues in this loop.

    # Fold the recurrent outputs into the first Linear with one small matmul.
    acc = acc + jnp.dot(w1r_ref[...], hbuf_ref[...],
                        preferred_element_type=jnp.float32)

    # Rest of the MLP (Dropout == identity in eval mode).
    h1 = jnp.maximum(acc, 0.0)
    h2 = jnp.dot(w2_ref[...], h1, preferred_element_type=jnp.float32) + b2_ref[...]
    h2 = jnp.maximum(h2, 0.0)
    out = jnp.dot(w3_ref[...], h2, preferred_element_type=jnp.float32) + b3_ref[...]
    o_ref[...] = out.astype(o_ref.dtype)               # lane-dense store


def rnn_mlp_forward(x, params, *, tile_b=16384):
    """x: (B, 36) float32 (PyTorch batch-major layout). Returns (B, 1) float32."""
    rnn_p, w1, b1, w2, b2, w3, b3 = params             # PyTorch (out, in) weights
    h1u, h2u = HIDDEN_UNITS
    batch = x.shape[0]

    # Tiling: lanes come in 128s; use >=2 grid tiles whenever the padded batch
    # allows so both v7x TensorCores get work (dimension_semantics parallel).
    b128 = pl.cdiv(batch, 128) * 128
    num_tiles = max(pl.cdiv(b128, tile_b), 2 if b128 >= 256 else 1)
    tile_b = pl.cdiv(b128 // 128, num_tiles) * 128
    b_pad = num_tiles * tile_b

    # Single feature-major input stream (batch on the lane axis), padded to
    # the tile grid.  No wrapper-side concatenate.
    # TODO(synk): the transpose is still one extra HBM pass over the input; a
    # feature-major producer (emitting (36, B) directly) would remove it.
    xt = jnp.pad(jnp.transpose(x).astype(jnp.float32),
                 ((0, 0), (0, b_pad - batch)))                          # (36, b_pad)

    # PyTorch Linear weights are (out, in) -- exactly what the feature-major
    # layout needs.  Zero W1's 10 recurrent columns so the single
    # (H1,36)@(36,tile_b) matmul only picks up [Z, V]; the hidden states
    # re-enter through w1r @ hbuf inside the kernel.
    w1f = w1.astype(jnp.float32)
    w1x = w1f.at[:, 1:1 + SEQ_LEN].set(0.0)                             # (H1, 36)
    w1r = w1f[:, 1:1 + SEQ_LEN]                                         # (H1, 10)
    b1c = b1.reshape(h1u, 1).astype(jnp.float32)
    b2c = b2.reshape(h2u, 1).astype(jnp.float32)
    b3c = b3.reshape(1, 1).astype(jnp.float32)

    def resident(shape):                       # weights: constant index_map
        return pl.BlockSpec(shape, lambda i: (0, 0))

    out_pad = pl.pallas_call(
        rnn_mlp_kernel,
        out_shape=jax.ShapeDtypeStruct((1, b_pad), jnp.float32),
        grid=(num_tiles,),
        in_specs=[
            pl.BlockSpec(memory_space=pltpu.MemorySpace.SMEM),       # rnn scalars
            pl.BlockSpec((IN_FEATURES, tile_b), lambda i: (0, i)),   # xt
            resident((h1u, IN_FEATURES)),                            # w1x (seq cols zeroed)
            resident((h1u, SEQ_LEN)),                                # w1r
            resident((h1u, 1)),                                      # b1
            resident((h2u, h1u)),                                    # w2
            resident((h2u, 1)),                                      # b2
            resident((1, h2u)),                                      # w3
            resident((1, 1)),                                        # b3
        ],
        out_specs=pl.BlockSpec((1, tile_b), lambda i: (0, i)),
        scratch_shapes=[pltpu.VMEM((SEQ_LEN, tile_b), jnp.float32)],
        compiler_params=pltpu.CompilerParams(
            dimension_semantics=("parallel",),
            vmem_limit_bytes=40 * 1024 * 1024),
    )(rnn_p.astype(jnp.float32),
      xt, w1x, w1r, b1c, w2.astype(jnp.float32), b2c, w3.astype(jnp.float32), b3c)

    return out_pad[0, :batch].reshape(batch, 1)


def init_params(key):
    """Deterministic PyTorch-style (uniform +-1/sqrt(fan_in)) init, (out, in) weights."""
    ks = jax.random.split(key, 10)

    def unif(k, shape, fan_in):
        bound = 1.0 / jnp.sqrt(jnp.float32(fan_in))
        return jax.random.uniform(k, shape, jnp.float32, -bound, bound)

    # nn.RNN(input_size=1, hidden_size=1): weight_ih, weight_hh, bias_ih, bias_hh
    rnn_p = jnp.concatenate([unif(ks[i], (1,), N_HIDDEN) for i in range(4)])

    h1u, h2u = HIDDEN_UNITS
    w1 = unif(ks[4], (h1u, IN_FEATURES), IN_FEATURES)
    b1 = unif(ks[5], (h1u,), IN_FEATURES)
    w2 = unif(ks[6], (h2u, h1u), h1u)
    b2 = unif(ks[7], (h2u,), h1u)
    w3 = unif(ks[8], (1, h2u), h2u)
    b3 = unif(ks[9], (1,), h2u)
    return rnn_p, w1, b1, w2, b2, w3, b3


def reference_forward(x, params):
    """Pure-JAX reference mirroring the PyTorch forward (eval mode)."""
    rnn_p, w1, b1, w2, b2, w3, b3 = params
    w_ih, w_hh, b_ih, b_hh = rnn_p[0], rnn_p[1], rnn_p[2], rnn_p[3]
    h = jnp.zeros((x.shape[0], 1), jnp.float32)
    outs = []
    for t in range(SEQ_LEN):
        h = jnp.tanh(x[:, 1 + t:2 + t] * w_ih + b_ih + h * w_hh + b_hh)
        outs.append(h)
    feat = jnp.concatenate([x[:, 0:1]] + outs + [x[:, 11:]], axis=1)
    y = jnp.maximum(feat @ w1.T + b1, 0.0)
    y = jnp.maximum(y @ w2.T + b2, 0.0)
    return y @ w3.T + b3


if __name__ == "__main__":
    key = jax.random.PRNGKey(0)
    k_x, k_p = jax.random.split(key)

    B = 8
    X = jax.random.normal(k_x, (B, IN_FEATURES), dtype=jnp.float32)
    params = init_params(k_p)

    out = rnn_mlp_forward(X, params)
    out = jax.block_until_ready(out)

    ref = reference_forward(X, params)
    assert out.shape == (B, 1)
    assert jnp.allclose(out, ref, atol=2e-5, rtol=2e-5), "mismatch vs reference"

    print("KERNEL_OK")
</pallas_src>

<mosaic_0001>
module attributes {stable_mosaic.version = 11 : i64} {
  func.func @rnn_mlp_kernel(%arg0: i32, %arg1: memref<4xf32, #tpu.memory_space<smem>>, %arg2: memref<36x128xf32, #tpu.memory_space<vmem>>, %arg3: memref<32x36xf32, #tpu.memory_space<vmem>>, %arg4: memref<32x10xf32, #tpu.memory_space<vmem>>, %arg5: memref<32x1xf32, #tpu.memory_space<vmem>>, %arg6: memref<32x32xf32, #tpu.memory_space<vmem>>, %arg7: memref<32x1xf32, #tpu.memory_space<vmem>>, %arg8: memref<1x32xf32, #tpu.memory_space<vmem>>, %arg9: memref<1x1xf32, #tpu.memory_space<vmem>>, %arg10: memref<1x128xf32, #tpu.memory_space<vmem>>, %arg11: memref<10x128xf32, #tpu.memory_space<vmem>>) attributes {dimension_semantics = [#tpu.dimension_semantics<parallel>], iteration_bounds = array<i64: 1>, scalar_prefetch = 0 : i64, scratch_operands = 1 : i64, tpu.core_type = #tpu.core_type<tc>, window_params = [{transform_indices = @transform_0, window_bounds = array<i64: 4>}, {transform_indices = @transform_1, window_bounds = array<i64: 36, 128>}, {pipeline_mode = #tpu.pipeline_mode<synchronous>, transform_indices = @transform_2, window_bounds = array<i64: 32, 36>}, {pipeline_mode = #tpu.pipeline_mode<synchronous>, transform_indices = @transform_3, window_bounds = array<i64: 32, 10>}, {pipeline_mode = #tpu.pipeline_mode<synchronous>, transform_indices = @transform_4, window_bounds = array<i64: 32, 1>}, {pipeline_mode = #tpu.pipeline_mode<synchronous>, transform_indices = @transform_5, window_bounds = array<i64: 32, 32>}, {pipeline_mode = #tpu.pipeline_mode<synchronous>, transform_indices = @transform_6, window_bounds = array<i64: 32, 1>}, {pipeline_mode = #tpu.pipeline_mode<synchronous>, transform_indices = @transform_7, window_bounds = array<i64: 1, 32>}, {pipeline_mode = #tpu.pipeline_mode<synchronous>, transform_indices = @transform_8, window_bounds = array<i64: 1, 1>}, {transform_indices = @transform_9, window_bounds = array<i64: 1, 128>}]} {
    %c0 = arith.constant 0 : index
    %0 = memref.load %arg1[%c0] : memref<4xf32, #tpu.memory_space<smem>>
    %c1 = arith.constant 1 : index
    %1 = memref.load %arg1[%c1] : memref<4xf32, #tpu.memory_space<smem>>
    %c2 = arith.constant 2 : index
    %2 = memref.load %arg1[%c2] : memref<4xf32, #tpu.memory_space<smem>>
    %c3 = arith.constant 3 : index
    %3 = memref.load %arg1[%c3] : memref<4xf32, #tpu.memory_space<smem>>
    %4 = arith.addf %2, %3 : f32
    %c0_0 = arith.constant 0 : index
    %c0_1 = arith.constant 0 : index
    %5 = vector.load %arg3[%c0_0, %c0_1] : memref<32x36xf32, #tpu.memory_space<vmem>>, vector<32x36xf32>
    %c0_2 = arith.constant 0 : index
    %c0_3 = arith.constant 0 : index
    %6 = vector.load %arg2[%c0_2, %c0_3] : memref<36x128xf32, #tpu.memory_space<vmem>>, vector<36x128xf32>
    %cst = arith.constant dense<0.000000e+00> : vector<32x128xf32>
    %7 = tpu.matmul %5, %6, %cst {dimension_numbers = #tpu.dot_dimension_numbers<[1], [0], [0], [1], [0, 0, 1, 1], [], []>} : vector<32x36xf32>, vector<36x128xf32>, vector<32x128xf32> -> vector<32x128xf32>
    %c0_4 = arith.constant 0 : index
    %c0_5 = arith.constant 0 : index
    %8 = vector.load %arg5[%c0_4, %c0_5] : memref<32x1xf32, #tpu.memory_space<vmem>>, vector<32x1xf32>
    %9 = vector.broadcast %8 : vector<32x1xf32> to vector<32x128xf32>
    %10 = arith.addf %7, %9 : vector<32x128xf32>
    %c1_6 = arith.constant 1 : index
    %c0_7 = arith.constant 0 : index
    %11 = vector.load %arg2[%c1_6, %c0_7] : memref<36x128xf32, #tpu.memory_space<vmem>>, vector<10x128xf32>
    %12 = vector.broadcast %0 : f32 to vector<10x128xf32>
    %13 = arith.mulf %11, %12 : vector<10x128xf32>
    %14 = vector.broadcast %4 : f32 to vector<10x128xf32>
    %15 = arith.addf %13, %14 : vector<10x128xf32>
    %c0_8 = arith.constant 0 : index
    %c0_9 = arith.constant 0 : index
    %16 = vector.load %arg11[%c0_8, %c0_9] : memref<10x128xf32, #tpu.memory_space<vmem>>, vector<10x128xf32>
    tpu.vector_store %arg11[%c0_8, %c0_9], %15 {strides = array<i32>} : memref<10x128xf32, #tpu.memory_space<vmem>>, vector<10x128xf32>,
    %cst_10 = arith.constant 0.000000e+00 : f32
    %17 = vector.broadcast %cst_10 : f32 to vector<1x128xf32>
    %c0_11 = arith.constant 0 : index
    %c0_12 = arith.constant 0 : index
    %18 = vector.load %arg11[%c0_11, %c0_12] : memref<10x128xf32, #tpu.memory_space<vmem>>, vector<1x128xf32>
    %19 = vector.broadcast %1 : f32 to vector<1x128xf32>
    %20 = arith.mulf %17, %19 : vector<1x128xf32>
    %21 = arith.addf %18, %20 : vector<1x128xf32>
    %22 = math.tanh %21 : vector<1x128xf32>
    %c0_13 = arith.constant 0 : index
    %c0_14 = arith.constant 0 : index
    %23 = vector.load %arg11[%c0_13, %c0_14] : memref<10x128xf32, #tpu.memory_space<vmem>>, vector<1x128xf32>
    tpu.vector_store %arg11[%c0_13, %c0_14], %22 {strides = array<i32>} : memref<10x128xf32, #tpu.memory_space<vmem>>, vector<1x128xf32>,
    %c1_15 = arith.constant 1 : index
    %c0_16 = arith.constant 0 : index
    %24 = vector.load %arg11[%c1_15, %c0_16] : memref<10x128xf32, #tpu.memory_space<vmem>>, vector<1x128xf32>
    %25 = vector.broadcast %1 : f32 to vector<1x128xf32>
    %26 = arith.mulf %22, %25 : vector<1x128xf32>
    %27 = arith.addf %24, %26 : vector<1x128xf32>
    %28 = math.tanh %27 : vector<1x128xf32>
    %c1_17 = arith.constant 1 : index
    %c0_18 = arith.constant 0 : index
    %29 = vector.load %arg11[%c1_17, %c0_18] : memref<10x128xf32, #tpu.memory_space<vmem>>, vector<1x128xf32>
    tpu.vector_store %arg11[%c1_17, %c0_18], %28 {strides = array<i32>} : memref<10x128xf32, #tpu.memory_space<vmem>>, vector<1x128xf32>,
    %c2_19 = arith.constant 2 : index
    %c0_20 = arith.constant 0 : index
    %30 = vector.load %arg11[%c2_19, %c0_20] : memref<10x128xf32, #tpu.memory_space<vmem>>, vector<1x128xf32>
    %31 = vector.broadcast %1 : f32 to vector<1x128xf32>
    %32 = arith.mulf %28, %31 : vector<1x128xf32>
    %33 = arith.addf %30, %32 : vector<1x128xf32>
    %34 = math.tanh %33 : vector<1x128xf32>
    %c2_21 = arith.constant 2 : index
    %c0_22 = arith.constant 0 : index
    %35 = vector.load %arg11[%c2_21, %c0_22] : memref<10x128xf32, #tpu.memory_space<vmem>>, vector<1x128xf32>
    tpu.vector_store %arg11[%c2_21, %c0_22], %34 {strides = array<i32>} : memref<10x128xf32, #tpu.memory_space<vmem>>, vector<1x128xf32>,
    %c3_23 = arith.constant 3 : index
    %c0_24 = arith.constant 0 : index
    %36 = vector.load %arg11[%c3_23, %c0_24] : memref<10x128xf32, #tpu.memory_space<vmem>>, vector<1x128xf32>
    %37 = vector.broadcast %1 : f32 to vector<1x128xf32>
    %38 = arith.mulf %34, %37 : vector<1x128xf32>
    %39 = arith.addf %36, %38 : vector<1x128xf32>
    %40 = math.tanh %39 : vector<1x128xf32>
    %c3_25 = arith.constant 3 : index
    %c0_26 = arith.constant 0 : index
    %41 = vector.load %arg11[%c3_25, %c0_26] : memref<10x128xf32, #tpu.memory_space<vmem>>, vector<1x128xf32>
    tpu.vector_store %arg11[%c3_25, %c0_26], %40 {strides = array<i32>} : memref<10x128xf32, #tpu.memory_space<vmem>>, vector<1x128xf32>,
    %c4 = arith.constant 4 : index
    %c0_27 = arith.constant 0 : index
    %42 = vector.load %arg11[%c4, %c0_27] : memref<10x128xf32, #tpu.memory_space<vmem>>, vector<1x128xf32>
    %43 = vector.broadcast %1 : f32 to vector<1x128xf32>
    %44 = arith.mulf %40, %43 : vector<1x128xf32>
    %45 = arith.addf %42, %44 : vector<1x128xf32>
    %46 = math.tanh %45 : vector<1x128xf32>
    %c4_28 = arith.constant 4 : index
    %c0_29 = arith.constant 0 : index
    %47 = vector.load %arg11[%c4_28, %c0_29] : memref<10x128xf32, #tpu.memory_space<vmem>>, vector<1x128xf32>
    tpu.vector_store %arg11[%c4_28, %c0_29], %46 {strides = array<i32>} : memref<10x128xf32, #tpu.memory_space<vmem>>, vector<1x128xf32>,
    %c5 = arith.constant 5 : index
    %c0_30 = arith.constant 0 : index
    %48 = vector.load %arg11[%c5, %c0_30] : memref<10x128xf32, #tpu.memory_space<vmem>>, vector<1x128xf32>
    %49 = vector.broadcast %1 : f32 to vector<1x128xf32>
    %50 = arith.mulf %46, %49 : vector<1x128xf32>
    %51 = arith.addf %48, %50 : vector<1x128xf32>
    %52 = math.tanh %51 : vector<1x128xf32>
    %c5_31 = arith.constant 5 : index
    %c0_32 = arith.constant 0 : index
    %53 = vector.load %arg11[%c5_31, %c0_32] : memref<10x128xf32, #tpu.memory_space<vmem>>, vector<1x128xf32>
    tpu.vector_store %arg11[%c5_31, %c0_32], %52 {strides = array<i32>} : memref<10x128xf32, #tpu.memory_space<vmem>>, vector<1x128xf32>,
    %c6 = arith.constant 6 : index
    %c0_33 = arith.constant 0 : index
    %54 = vector.load %arg11[%c6, %c0_33] : memref<10x128xf32, #tpu.memory_space<vmem>>, vector<1x128xf32>
    %55 = vector.broadcast %1 : f32 to vector<1x128xf32>
    %56 = arith.mulf %52, %55 : vector<1x128xf32>
    %57 = arith.addf %54, %56 : vector<1x128xf32>
    %58 = math.tanh %57 : vector<1x128xf32>
    %c6_34 = arith.constant 6 : index
    %c0_35 = arith.constant 0 : index
    %59 = vector.load %arg11[%c6_34, %c0_35] : memref<10x128xf32, #tpu.memory_space<vmem>>, vector<1x128xf32>
    tpu.vector_store %arg11[%c6_34, %c0_35], %58 {strides = array<i32>} : memref<10x128xf32, #tpu.memory_space<vmem>>, vector<1x128xf32>,
    %c7 = arith.constant 7 : index
    %c0_36 = arith.constant 0 : index
    %60 = vector.load %arg11[%c7, %c0_36] : memref<10x128xf32, #tpu.memory_space<vmem>>, vector<1x128xf32>
    %61 = vector.broadcast %1 : f32 to vector<1x128xf32>
    %62 = arith.mulf %58, %61 : vector<1x128xf32>
    %63 = arith.addf %60, %62 : vector<1x128xf32>
    %64 = math.tanh %63 : vector<1x128xf32>
    %c7_37 = arith.constant 7 : index
    %c0_38 = arith.constant 0 : index
    %65 = vector.load %arg11[%c7_37, %c0_38] : memref<10x128xf32, #tpu.memory_space<vmem>>, vector<1x128xf32>
    tpu.vector_store %arg11[%c7_37, %c0_38], %64 {strides = array<i32>} : memref<10x128xf32, #tpu.memory_space<vmem>>, vector<1x128xf32>,
    %c8 = arith.constant 8 : index
    %c0_39 = arith.constant 0 : index
    %66 = vector.load %arg11[%c8, %c0_39] : memref<10x128xf32, #tpu.memory_space<vmem>>, vector<1x128xf32>
    %67 = vector.broadcast %1 : f32 to vector<1x128xf32>
    %68 = arith.mulf %64, %67 : vector<1x128xf32>
    %69 = arith.addf %66, %68 : vector<1x128xf32>
    %70 = math.tanh %69 : vector<1x128xf32>
    %c8_40 = arith.constant 8 : index
    %c0_41 = arith.constant 0 : index
    %71 = vector.load %arg11[%c8_40, %c0_41] : memref<10x128xf32, #tpu.memory_space<vmem>>, vector<1x128xf32>
    tpu.vector_store %arg11[%c8_40, %c0_41], %70 {strides = array<i32>} : memref<10x128xf32, #tpu.memory_space<vmem>>, vector<1x128xf32>,
    %c9 = arith.constant 9 : index
    %c0_42 = arith.constant 0 : index
    %72 = vector.load %arg11[%c9, %c0_42] : memref<10x128xf32, #tpu.memory_space<vmem>>, vector<1x128xf32>
    %73 = vector.broadcast %1 : f32 to vector<1x128xf32>
    %74 = arith.mulf %70, %73 : vector<1x128xf32>
    %75 = arith.addf %72, %74 : vector<1x128xf32>
    %76 = math.tanh %75 : vector<1x128xf32>
    %c9_43 = arith.constant 9 : index
    %c0_44 = arith.constant 0 : index
    %77 = vector.load %arg11[%c9_43, %c0_44] : memref<10x128xf32, #tpu.memory_space<vmem>>, vector<1x128xf32>
    tpu.vector_store %arg11[%c9_43, %c0_44], %76 {strides = array<i32>} : memref<10x128xf32, #tpu.memory_space<vmem>>, vector<1x128xf32>,
    %c0_45 = arith.constant 0 : index
    %c0_46 = arith.constant 0 : index
    %78 = vector.load %arg4[%c0_45, %c0_46] : memref<32x10xf32, #tpu.memory_space<vmem>>, vector<32x10xf32>
    %c0_47 = arith.constant 0 : index
    %c0_48 = arith.constant 0 : index
    %79 = vector.load %arg11[%c0_47, %c0_48] : memref<10x128xf32, #tpu.memory_space<vmem>>, vector<10x128xf32>
    %cst_49 = arith.constant dense<0.000000e+00> : vector<32x128xf32>
    %80 = tpu.matmul %78, %79, %cst_49 {dimension_numbers = #tpu.dot_dimension_numbers<[1], [0], [0], [1], [0, 0, 1, 1], [], []>} : vector<32x10xf32>, vector<10x128xf32>, vector<32x128xf32> -> vector<32x128xf32>
    %81 = arith.addf %10, %80 : vector<32x128xf32>
    %cst_50 = arith.constant 0.000000e+00 : f32
    %82 = vector.broadcast %cst_50 : f32 to vector<32x128xf32>
    %83 = arith.maximumf %81, %82 : vector<32x128xf32>
    %c0_51 = arith.constant 0 : index
    %c0_52 = arith.constant 0 : index
    %84 = vector.load %arg6[%c0_51, %c0_52] : memref<32x32xf32, #tpu.memory_space<vmem>>, vector<32x32xf32>
    %cst_53 = arith.constant dense<0.000000e+00> : vector<32x128xf32>
    %85 = tpu.matmul %84, %83, %cst_53 {dimension_numbers = #tpu.dot_dimension_numbers<[1], [0], [0], [1], [0, 0, 1, 1], [], []>} : vector<32x32xf32>, vector<32x128xf32>, vector<32x128xf32> -> vector<32x128xf32>
    %c0_54 = arith.constant 0 : index
    %c0_55 = arith.constant 0 : index
    %86 = vector.load %arg7[%c0_54, %c0_55] : memref<32x1xf32, #tpu.memory_space<vmem>>, vector<32x1xf32>
    %87 = vector.broadcast %86 : vector<32x1xf32> to vector<32x128xf32>
    %88 = arith.addf %85, %87 : vector<32x128xf32>
    %cst_56 = arith.constant 0.000000e+00 : f32
    %89 = vector.broadcast %cst_56 : f32 to vector<32x128xf32>
    %90 = arith.maximumf %88, %89 : vector<32x128xf32>
    %c0_57 = arith.constant 0 : index
    %c0_58 = arith.constant 0 : index
    %91 = vector.load %arg8[%c0_57, %c0_58] : memref<1x32xf32, #tpu.memory_space<vmem>>, vector<1x32xf32>
    %cst_59 = arith.constant dense<0.000000e+00> : vector<1x128xf32>
    %92 = tpu.matmul %91, %90, %cst_59 {dimension_numbers = #tpu.dot_dimension_numbers<[1], [0], [0], [1], [0, 0, 1, 1], [], []>} : vector<1x32xf32>, vector<32x128xf32>, vector<1x128xf32> -> vector<1x128xf32>
    %c0_60 = arith.constant 0 : index
    %c0_61 = arith.constant 0 : index
    %93 = vector.load %arg9[%c0_60, %c0_61] : memref<1x1xf32, #tpu.memory_space<vmem>>, vector<1x1xf32>
    %94 = vector.broadcast %93 : vector<1x1xf32> to vector<1x128xf32>
    %95 = arith.addf %92, %94 : vector<1x128xf32>
    %c0_62 = arith.constant 0 : index
    %c0_63 = arith.constant 0 : index
    %96 = vector.load %arg10[%c0_62, %c0_63] : memref<1x128xf32, #tpu.memory_space<vmem>>, vector<1x128xf32>
    tpu.vector_store %arg10[%c0_62, %c0_63], %95 {strides = array<i32>} : memref<1x128xf32, #tpu.memory_space<vmem>>, vector<1x128xf32>,
    return
  }
  func.func @transform_0(%arg0: i32) -> i32 {
    %c0_i32 = arith.constant 0 : i32
    %c0_i32_0 = arith.constant 0 : i32
    return %c0_i32 : i32
  }
  func.func @transform_1(%arg0: i32) -> (i32, i32) {
    %c0_i32 = arith.constant 0 : i32
    %c0_i32_0 = arith.constant 0 : i32
    return %c0_i32, %arg0 : i32, i32
  }
  func.func @transform_2(%arg0: i32) -> (i32, i32) {
    %c0_i32 = arith.constant 0 : i32
    %c0_i32_0 = arith.constant 0 : i32
    %c0_i32_1 = arith.constant 0 : i32
    return %c0_i32, %c0_i32_0 : i32, i32
  }
  func.func @transform_3(%arg0: i32) -> (i32, i32) {
    %c0_i32 = arith.constant 0 : i32
    %c0_i32_0 = arith.constant 0 : i32
    %c0_i32_1 = arith.constant 0 : i32
    return %c0_i32, %c0_i32_0 : i32, i32
  }
  func.func @transform_4(%arg0: i32) -> (i32, i32) {
    %c0_i32 = arith.constant 0 : i32
    %c0_i32_0 = arith.constant 0 : i32
    %c0_i32_1 = arith.constant 0 : i32
    return %c0_i32, %c0_i32_0 : i32, i32
  }
  func.func @transform_5(%arg0: i32) -> (i32, i32) {
    %c0_i32 = arith.constant 0 : i32
    %c0_i32_0 = arith.constant 0 : i32
    %c0_i32_1 = arith.constant 0 : i32
    return %c0_i32, %c0_i32_0 : i32, i32
  }
  func.func @transform_6(%arg0: i32) -> (i32, i32) {
    %c0_i32 = arith.constant 0 : i32
    %c0_i32_0 = arith.constant 0 : i32
    %c0_i32_1 = arith.constant 0 : i32
    return %c0_i32, %c0_i32_0 : i32, i32
  }
  func.func @transform_7(%arg0: i32) -> (i32, i32) {
    %c0_i32 = arith.constant 0 : i32
    %c0_i32_0 = arith.constant 0 : i32
    %c0_i32_1 = arith.constant 0 : i32
    return %c0_i32, %c0_i32_0 : i32, i32
  }
  func.func @transform_8(%arg0: i32) -> (i32, i32) {
    %c0_i32 = arith.constant 0 : i32
    %c0_i32_0 = arith.constant 0 : i32
    %c0_i32_1 = arith.constant 0 : i32
    return %c0_i32, %c0_i32_0 : i32, i32
  }
  func.func @transform_9(%arg0: i32) -> (i32, i32) {
    %c0_i32 = arith.constant 0 : i32
    %c0_i32_0 = arith.constant 0 : i32
    return %c0_i32, %arg0 : i32, i32
  }
}

</mosaic_0001>

<llo_original>
// kernel: tpu_custom_call.1
$region0: #{tpu_custom_call.1}
  #allocation0 [shape = 'u32[]', space=smem, size = 0x4, offset = 0x4, fixed_abs, tag = 'smem constant byte address 0x4 - core index']
  #allocation1 [shape = 'u32[72,128]{1,0:T(1,128)}', space=vmem, size = 0x9000, scoped, tag = 'internal scratch']
  #allocation2 [shape = 'f32[10,128]{1,0:T(8,128)}', space=vmem, size = 0x2000, scoped, tag = 'scratch operand']
  #allocation3 [shape = 'f32[1,1]{1,0:T(1,128)S(1)}', space=vmem, size = 0x200, scoped, tag = 'scoped memory for tpu_custom_call.1']
  %s0 = inlined_call_operand.vmem [shape: f32[4], index: 0, kind: input, shape index: {}]
  %s1 = inlined_call_operand.vmem [shape: f32[36,128], index: 1, kind: input, shape index: {}]
  %s2 = inlined_call_operand.vmem [shape: f32[32,36], index: 2, kind: input, shape index: {}]
  %s3 = inlined_call_operand.vmem [shape: f32[32,10], index: 3, kind: input, shape index: {}]
  %s4 = inlined_call_operand.vmem [shape: f32[32,1], index: 4, kind: input, shape index: {}]
  %s5 = inlined_call_operand.vmem [shape: f32[32,32], index: 5, kind: input, shape index: {}]
  %s6 = inlined_call_operand.vmem [shape: f32[32,1], index: 6, kind: input, shape index: {}]
  %s7 = inlined_call_operand.vmem [shape: f32[1,32], index: 7, kind: input, shape index: {}]
  %s8 = inlined_call_operand.<no memory space> [shape: f32[1,1], index: 8, kind: input, shape index: {}]
  %s9 = inlined_call_operand.hbm [shape: f32[1,128], index: 9, kind: output, shape index: {}]
  %s10 = sld [smem:[#allocation0]]
  $region50: #{tpu_custom_call.1} parent=0
    _
  %s12 = ssub.s32 1, %s10
  %s13 = scalar_select 0, %s12, %s10
  %v14 = vstv %s8
  %15 = vst [vmem:[#allocation3] sm:$0x1] %v14
  $region1: #{tpu_custom_call.1} parent=0
    #allocation4 [shape = 'u8[512]{0}', space=smem, size = 0x200, scoped, tag = 'input window, operand 0, single buffered']
    #allocation5 [shape = 's32[1]{0}', space=sflag, size = 0x4, scoped, tag = 'scoped memory for tpu_custom_call.1']
    #allocation6 [shape = 's32[1]{0}', space=sflag, size = 0x4, scoped, tag = 'scoped memory for tpu_custom_call.1']
    #allocation7 [shape = 'u8[512]{0}', space=vmem, size = 0x400, scoped, tag = 'output window, operand 0, single buffered']
    %16 = vsyncpa [#allocation6], 0
    %17 = vsyncpa [#allocation5], 0
    // Predicated region
    $region2: #{tpu_custom_call.1} parent=1 // pred_check
      _
    $region3: #{tpu_custom_call.1} parent=1 // pred_check_branch
      %19 = sbr.rel (0) target = $region5
    $region4: #{tpu_custom_call.1} parent=1 // pred_region
      %21 = vsyncadd [#allocation6], 0
      %s23 = sshll.u32 %s0, 4
      %s24 = int_to_ptr.vmem [resolvable:$true] %s23
      %26 = dma.vmem_to_smem %s24, 16, [#allocation4], [#allocation6]
    $region5: #{tpu_custom_call.1} parent=1 // pred_fallthru
      _
    // Predicated region
    $region6: #{tpu_custom_call.1} parent=1 // pred_check
      _
    $region7: #{tpu_custom_call.1} parent=1 // pred_check_branch
      %28 = sbr.rel (0) target = $region9
    $region8: #{tpu_custom_call.1} parent=1 // pred_region
      _
    $region9: #{tpu_custom_call.1} parent=1 // pred_fallthru
      _
    // Predicated region
    $region10: #{tpu_custom_call.1} parent=1 // pred_check
      _
    $region11: #{tpu_custom_call.1} parent=1 // pred_check_branch
      %30 = sbr.rel (0) target = $region13
    $region12: #{tpu_custom_call.1} parent=1 // pred_region
      _
    $region13: #{tpu_custom_call.1} parent=1 // pred_fallthru
      _
    // Predicated region
    $region14: #{tpu_custom_call.1} parent=1 // pred_check
      _
    $region15: #{tpu_custom_call.1} parent=1 // pred_check_branch
      %32 = sbr.rel (0) target = $region17
    $region16: #{tpu_custom_call.1} parent=1 // pred_region
      _
    $region17: #{tpu_custom_call.1} parent=1 // pred_fallthru
      _
    // Predicated region
    $region18: #{tpu_custom_call.1} parent=1 // pred_check
      _
    $region19: #{tpu_custom_call.1} parent=1 // pred_check_branch
      %34 = sbr.rel (0) target = $region21
    $region20: #{tpu_custom_call.1} parent=1 // pred_region
      _
    $region21: #{tpu_custom_call.1} parent=1 // pred_fallthru
      _
    // Predicated region
    $region22: #{tpu_custom_call.1} parent=1 // pred_check
      _
    $region23: #{tpu_custom_call.1} parent=1 // pred_check_branch
      %36 = sbr.rel (0) target = $region25
    $region24: #{tpu_custom_call.1} parent=1 // pred_region
      _
    $region25: #{tpu_custom_call.1} parent=1 // pred_fallthru
      _
    // Predicated region
    $region26: #{tpu_custom_call.1} parent=1 // pred_check
      _
    $region27: #{tpu_custom_call.1} parent=1 // pred_check_branch
      %38 = sbr.rel (0) target = $region29
    $region28: #{tpu_custom_call.1} parent=1 // pred_region
      _
    $region29: #{tpu_custom_call.1} parent=1 // pred_fallthru
      _
    // Predicated region
    $region30: #{tpu_custom_call.1} parent=1 // pred_check
      _
    $region31: #{tpu_custom_call.1} parent=1 // pred_check_branch
      %40 = sbr.rel (0) target = $region33
    $region32: #{tpu_custom_call.1} parent=1 // pred_region
      _
    $region33: #{tpu_custom_call.1} parent=1 // pred_fallthru
      _
    // Predicated region
    $region34: #{tpu_custom_call.1} parent=1 // pred_check
      _
    $region35: #{tpu_custom_call.1} parent=1 // pred_check_branch
      %42 = sbr.rel (0) target = $region37
    $region36: #{tpu_custom_call.1} parent=1 // pred_region
      _
    $region37: #{tpu_custom_call.1} parent=1 // pred_fallthru
      _
    // Predicated region
    $region38: #{tpu_custom_call.1} parent=1 // pred_check
      _
    $region39: #{tpu_custom_call.1} parent=1 // pred_check_branch
      %44 = sbr.rel (0) target = $region41
    $region40: #{tpu_custom_call.1} parent=1 // pred_region
      %46 = dma.done [#allocation6], 16
    $region41: #{tpu_custom_call.1} parent=1 // pred_fallthru
      _
    %47 = sfence
    %s48 = sld [smem:[#allocation4]]
    %s49 = sld [smem:[#allocation4 + $0x1]]
    %s50 = sld [smem:[#allocation4 + $0x2]]
    %s51 = sld [smem:[#allocation4 + $0x3]]
    %s52 = sadd.f32 %s50, %s51
    %v53 = vld [vmem:[%s2] sm:$0xff]
    %v54 = vld [vmem:[%s2 + $0x8] sm:$0xff]
    %v55 = vld [vmem:[%s2 + $0x10] sm:$0xff]
    %v56 = vld [vmem:[%s2 + $0x18] sm:$0xff]
    %v57 = vld [vmem:[%s1] sm:$0xff]
    %v58 = vld [vmem:[%s1 + $0x8] sm:$0xff]
    %v59 = vld [vmem:[%s1 + $0x10] sm:$0xff]
    %v60 = vld [vmem:[%s1 + $0x18] sm:$0xff]
    %v61 = vld [vmem:[%s1 + $0x20] sm:$0xf]
    %v62 = vld [vmem:[%s4] sm:$0xff]
    %v63 = vld [vmem:[%s4 + $0x8] sm:$0xff]
    %v64 = vld [vmem:[%s4 + $0x10] sm:$0xff]
    %v65 = vld [vmem:[%s4 + $0x18] sm:$0xff]
    %67 = vset.pattern.permute.xlu0 0
    %68 = vperm.xlu0 %67, %v62
    %v69 = vpop.permute.xlu0 %68
    %72 = vset.pattern.permute.xlu0 0
    %73 = vperm.xlu0 %72, %v63
    %v74 = vpop.permute.xlu0 %73
    %77 = vset.pattern.permute.xlu0 0
    %78 = vperm.xlu0 %77, %v64
    %v79 = vpop.permute.xlu0 %78
    %82 = vset.pattern.permute.xlu0 0
    %83 = vperm.xlu0 %82, %v65
    %v84 = vpop.permute.xlu0 %83
    %vm86 = vcmask 293888
    %v88 = vsel %vm86, %v53, 0
    %v91 = vsel %vm86, %v54, 0
    %v94 = vsel %vm86, %v55, 0
    %v97 = vsel %vm86, %v56, 0
    %vm99 = vcmask 1043456
    %v101 = vsel %vm99, %v61, 0
    %103 = vmatpush.msra.mxu0 0.0
    %104 = vmatpush.msra.mxu0 0.0
    %105 = vmatpush.msra.mxu0 0.0
    %106 = vmatpush.msra.mxu0 0.0
    %107 = vmatpush.msra.mxu0 0.0
    %108 = vmatpush.msra.mxu0 0.0
    %109 = vmatpush.msra.mxu0 0.0
    %110 = vmatpush.msra.mxu0 0.0
    %111 = vmatpush.msra.mxu0 0.0
    %112 = vmatpush.msra.mxu0 0.0
    %113 = vmatpush.msra.mxu0 0.0
    %114 = vmatpush.msra.mxu0 %v101
    %115 = vmatpush.msra.mxu0 %v60
    %116 = vmatpush.msra.mxu0 %v59
    %117 = vmatpush.msra.mxu0 %v58
    %118 = vmatpush.msra.mxu0 %v57
    %119 = vmatmul.f32.gmra.mxu0 %v88
    %v120 = vpop.f32.mrf.mxu0
    %v121 = vadd.f32 %v69, %v120
    %122 = vmatmul.f32.gmra.mxu0 %v91
    %v123 = vpop.f32.mrf.mxu0
    %v124 = vadd.f32 %v74, %v123
    %125 = vmatmul.f32.gmra.mxu0 %v94
    %v126 = vpop.f32.mrf.mxu0
    %v127 = vadd.f32 %v79, %v126
    %128 = vmatmul.f32.gmra.mxu0 %v97
    %v129 = vpop.f32.mrf.mxu0
    %v130 = vadd.f32 %v84, %v129
    %131 = vdwg.mxu0
    %v132 = vld [vmem:[%s1 + $0x1] sm:$0xff]
    %v133 = vld [vmem:[%s1 + $0x9] sm:$0x3]
    %v134 = vstv %s48
    %v135 = vmul.f32 %v132, %v134
    %v136 = vmul.f32 %v133, %v134
    %v137 = vstv %s52
    %v138 = vadd.f32 %v135, %v137
    %v139 = vadd.f32 %v136, %v137
    %140 = vst [vmem:[#allocation2] sm:$0xff] %v138
    %141 = vst [vmem:[#allocation2 + $0x8] sm:$0x3] %v139
    %v142 = vld [vmem:[#allocation2] sm:$0x1]
    %v143 = vstv %s49
    %v144 = vmul.f32 %v143, 0.0
    %v145 = vadd.f32 %v142, %v144
    %v146 = vtanh.pop %v145
    %147 = vst [vmem:[#allocation2] sm:$0x1] %v146
    %v148 = vld [vmem:[#allocation2 + $0x1] sm:$0x1]
    %v149 = vmul.f32 %v146, %v143
    %v150 = vadd.f32 %v148, %v149
    %v151 = vtanh.pop %v150
    %152 = vst [vmem:[#allocation2 + $0x1] sm:$0x1] %v151
    %v153 = vld [vmem:[#allocation2 + $0x2] sm:$0x1]
    %v154 = vmul.f32 %v151, %v143
    %v155 = vadd.f32 %v153, %v154
    %v156 = vtanh.pop %v155
    %157 = vst [vmem:[#allocation2 + $0x2] sm:$0x1] %v156
    %v158 = vld [vmem:[#allocation2 + $0x3] sm:$0x1]
    %v159 = vmul.f32 %v156, %v143
    %v160 = vadd.f32 %v158, %v159
    %v161 = vtanh.pop %v160
    %162 = vst [vmem:[#allocation2 + $0x3] sm:$0x1] %v161
    %v163 = vld [vmem:[#allocation2 + $0x4] sm:$0x1]
    %v164 = vmul.f32 %v161, %v143
    %v165 = vadd.f32 %v163, %v164
    %v166 = vtanh.pop %v165
    %167 = vst [vmem:[#allocation2 + $0x4] sm:$0x1] %v166
    %v168 = vld [vmem:[#allocation2 + $0x5] sm:$0x1]
    %v169 = vmul.f32 %v166, %v143
    %v170 = vadd.f32 %v168, %v169
    %v171 = vtanh.pop %v170
    %172 = vst [vmem:[#allocation2 + $0x5] sm:$0x1] %v171
    %v173 = vld [vmem:[#allocation2 + $0x6] sm:$0x1]
    %v174 = vmul.f32 %v171, %v143
    %v175 = vadd.f32 %v173, %v174
    %v176 = vtanh.pop %v175
    %177 = vst [vmem:[#allocation2 + $0x6] sm:$0x1] %v176
    %v178 = vld [vmem:[#allocation2 + $0x7] sm:$0x1]
    %v179 = vmul.f32 %v176, %v143
    %v180 = vadd.f32 %v178, %v179
    %v181 = vtanh.pop %v180
    %182 = vst [vmem:[#allocation2 + $0x7] sm:$0x1] %v181
    %v183 = vld [vmem:[#allocation2 + $0x8] sm:$0x1]
    %v184 = vmul.f32 %v181, %v143
    %v185 = vadd.f32 %v183, %v184
    %v186 = vtanh.pop %v185
    %187 = vst [vmem:[#allocation2 + $0x8] sm:$0x1] %v186
    %v188 = vld [vmem:[#allocation2 + $0x9] sm:$0x1]
    %v189 = vmul.f32 %v186, %v143
    %v190 = vadd.f32 %v188, %v189
    %v191 = vtanh.pop %v190
    %192 = vst [vmem:[#allocation2 + $0x9] sm:$0x1] %v191
    %v193 = vld [vmem:[%s3] sm:$0xff]
    %v194 = vld [vmem:[%s3 + $0x8] sm:$0xff]
    %v195 = vld [vmem:[%s3 + $0x10] sm:$0xff]
    %v196 = vld [vmem:[%s3 + $0x18] sm:$0xff]
    %v197 = vld [vmem:[#allocation2] sm:$0xff]
    %v198 = vld [vmem:[#allocation2 + $0x8] sm:$0x3]
    %vm199 = vcmask 80896
    %v201 = vsel %vm199, %v193, 0
    %v204 = vsel %vm199, %v194, 0
    %v207 = vsel %vm199, %v195, 0
    %v210 = vsel %vm199, %v196, 0
    %vm212 = vcmask 1041408
    %v214 = vsel %vm212, %v198, 0
    %216 = vmatpush.msra.mxu0 0.0
    %217 = vmatpush.msra.mxu0 0.0
    %218 = vmatpush.msra.mxu0 0.0
    %219 = vmatpush.msra.mxu0 0.0
    %220 = vmatpush.msra.mxu0 0.0
    %221 = vmatpush.msra.mxu0 0.0
    %222 = vmatpush.msra.mxu0 0.0
    %223 = vmatpush.msra.mxu0 0.0
    %224 = vmatpush.msra.mxu0 0.0
    %225 = vmatpush.msra.mxu0 0.0
    %226 = vmatpush.msra.mxu0 0.0
    %227 = vmatpush.msra.mxu0 0.0
    %228 = vmatpush.msra.mxu0 0.0
    %229 = vmatpush.msra.mxu0 0.0
    %230 = vmatpush.msra.mxu0 %v214
    %231 = vmatpush.msra.mxu0 %v197
    %232 = vmatmul.f32.gmra.mxu0 %v201
    %v233 = vpop.f32.mrf.mxu0
    %v234 = vadd.f32 0.0, %v233
    %235 = vmatmul.f32.gmra.mxu0 %v204
    %v236 = vpop.f32.mrf.mxu0
    %v237 = vadd.f32 0.0, %v236
    %238 = vmatmul.f32.gmra.mxu0 %v207
    %v239 = vpop.f32.mrf.mxu0
    %v240 = vadd.f32 0.0, %v239
    %241 = vmatmul.f32.gmra.mxu0 %v210
    %v242 = vpop.f32.mrf.mxu0
    %v243 = vadd.f32 0.0, %v242
    %244 = vdwg.mxu0
    %v245 = vadd.f32 %v121, %v234
    %v246 = vadd.f32 %v124, %v237
    %v247 = vadd.f32 %v127, %v240
    %v248 = vadd.f32 %v130, %v243
    %v249 = vmax.f32 %v245, 0.0
    %v250 = vmax.f32 %v246, 0.0
    %v251 = vmax.f32 %v247, 0.0
    %v252 = vmax.f32 %v248, 0.0
    %v253 = vld [vmem:[%s5] sm:$0xff]
    %v254 = vld [vmem:[%s5 + $0x8] sm:$0xff]
    %v255 = vld [vmem:[%s5 + $0x10] sm:$0xff]
    %v256 = vld [vmem:[%s5 + $0x18] sm:$0xff]
    %v257 = vld [vmem:[%s6] sm:$0xff]
    %v258 = vld [vmem:[%s6 + $0x8] sm:$0xff]
    %v259 = vld [vmem:[%s6 + $0x10] sm:$0xff]
    %v260 = vld [vmem:[%s6 + $0x18] sm:$0xff]
    %262 = vset.pattern.permute.xlu0 0
    %263 = vperm.xlu0 %262, %v257
    %v264 = vpop.permute.xlu0 %263
    %267 = vset.pattern.permute.xlu0 0
    %268 = vperm.xlu0 %267, %v258
    %v269 = vpop.permute.xlu0 %268
    %272 = vset.pattern.permute.xlu0 0
    %273 = vperm.xlu0 %272, %v259
    %v274 = vpop.permute.xlu0 %273
    %277 = vset.pattern.permute.xlu0 0
    %278 = vperm.xlu0 %277, %v260
    %v279 = vpop.permute.xlu0 %278
    %vm281 = vcmask 261120
    %v283 = vsel %vm281, %v253, 0
    %v286 = vsel %vm281, %v254, 0
    %v289 = vsel %vm281, %v255, 0
    %v292 = vsel %vm281, %v256, 0
    %294 = vmatpush.msra.mxu0 0.0
    %295 = vmatpush.msra.mxu0 0.0
    %296 = vmatpush.msra.mxu0 0.0
    %297 = vmatpush.msra.mxu0 0.0
    %298 = vmatpush.msra.mxu0 0.0
    %299 = vmatpush.msra.mxu0 0.0
    %300 = vmatpush.msra.mxu0 0.0
    %301 = vmatpush.msra.mxu0 0.0
    %302 = vmatpush.msra.mxu0 0.0
    %303 = vmatpush.msra.mxu0 0.0
    %304 = vmatpush.msra.mxu0 0.0
    %305 = vmatpush.msra.mxu0 0.0
    %306 = vmatpush.msra.mxu0 %v252
    %307 = vmatpush.msra.mxu0 %v251
    %308 = vmatpush.msra.mxu0 %v250
    %309 = vmatpush.msra.mxu0 %v249
    %310 = vmatmul.f32.gmra.mxu0 %v283
    %v311 = vpop.f32.mrf.mxu0
    %v312 = vadd.f32 %v264, %v311
    %313 = vmatmul.f32.gmra.mxu0 %v286
    %v314 = vpop.f32.mrf.mxu0
    %v315 = vadd.f32 %v269, %v314
    %316 = vmatmul.f32.gmra.mxu0 %v289
    %v317 = vpop.f32.mrf.mxu0
    %v318 = vadd.f32 %v274, %v317
    %319 = vmatmul.f32.gmra.mxu0 %v292
    %v320 = vpop.f32.mrf.mxu0
    %v321 = vadd.f32 %v279, %v320
    %322 = vdwg.mxu0
    %v323 = vmax.f32 %v312, 0.0
    %v324 = vmax.f32 %v315, 0.0
    %v325 = vmax.f32 %v318, 0.0
    %v326 = vmax.f32 %v321, 0.0
    %v327 = vld [vmem:[%s7] sm:$0x1]
    %v328 = vld [vmem:[#allocation3] sm:$0x1]
    %330 = vset.pattern.permute.xlu0 0
    %331 = vperm.xlu0 %330, %v328
    %v332 = vpop.permute.xlu0 %331
    %v334 = vperm.slane %v332, 0
    %v336 = vsel %vm281, %v327, 0
    %338 = vmatpush.msra.mxu0 0.0
    %339 = vmatpush.msra.mxu0 0.0
    %340 = vmatpush.msra.mxu0 0.0
    %341 = vmatpush.msra.mxu0 0.0
    %342 = vmatpush.msra.mxu0 0.0
    %343 = vmatpush.msra.mxu0 0.0
    %344 = vmatpush.msra.mxu0 0.0
    %345 = vmatpush.msra.mxu0 0.0
    %346 = vmatpush.msra.mxu0 0.0
    %347 = vmatpush.msra.mxu0 0.0
    %348 = vmatpush.msra.mxu0 0.0
    %349 = vmatpush.msra.mxu0 0.0
    %350 = vmatpush.msra.mxu0 %v326
    %351 = vmatpush.msra.mxu0 %v325
    %352 = vmatpush.msra.mxu0 %v324
    %353 = vmatpush.msra.mxu0 %v323
    %354 = vmatmul.f32.gmra.mxu0 %v336
    %v355 = vpop.f32.mrf.mxu0
    %v356 = vadd.f32 %v334, %v355
    %357 = vdwg.mxu0
    %358 = vst [vmem:[#allocation7] sm:$0x1] %v356
    // Predicated region
    $region42: #{tpu_custom_call.1} parent=1 // pred_check
      _
    $region43: #{tpu_custom_call.1} parent=1 // pred_check_branch
      %360 = sbr.rel (0) target = $region45
    $region44: #{tpu_custom_call.1} parent=1 // pred_region
      %362 = vsyncadd [#allocation5], 0
      %s364 = sshll.u32 [#allocation7], 4
      %s365 = int_to_ptr.vmem [resolvable:$true] %s364
      %s366 = sshll.u32 %s9, 4
      %s367 = int_to_ptr.hbm [resolvable:$true] %s366
      %369 = dma.vmem_to_hbm [thread:$0]  %s365, 16, %s367, [#allocation5]
    $region45: #{tpu_custom_call.1} parent=1 // pred_fallthru
      _
    // Predicated region
    $region46: #{tpu_custom_call.1} parent=1 // pred_check
      _
    $region47: #{tpu_custom_call.1} parent=1 // pred_check_branch
      %371 = sbr.rel (0) target = $region49
    $region48: #{tpu_custom_call.1} parent=1 // pred_region
      %373 = dma.done [#allocation5], 16
    $region49: #{tpu_custom_call.1} parent=1 // pred_fallthru
      _
    %374 = vsyncpa [#allocation5], 1
    %375 = vsyncpa [#allocation6], 1

</llo_original>
